<compile_context>
chip_gen: v6e
topology: v6e:2x2x1
jax: 0.10.0
libtpu: 0.0.40
codegen_flags: <defaults>
</compile_context>

<pallas_src>
import math

import jax
import jax.numpy as jnp
from jax.experimental import pallas as pl
from jax.experimental.pallas import tpu as pltpu

LN_EPS = 1e-5  # torch.nn.LayerNorm default


def _merge_reduce_norm_kernel(x_ref, w_ref, g_ref, b_ref, o_ref):
    # x_ref: (t_r, 2, wh, 2C)  -- both row-parity halves, one contiguous block
    # w_ref: (4C, 2C)          -- permuted 4C->2C reduction weight (bf16)
    # g_ref/b_ref: (1, 2C)     -- LayerNorm affine (f32)
    # o_ref: (t_r * wh, 2C)
    t_r, _, wh, two_c = x_ref.shape
    n_tok = t_r * wh
    cdt = w_ref.dtype  # MXU compute dtype (bf16)

    x = x_ref[...]
    # h2=0 half of each token = [x0 | x2]; h2=1 half = [x1 | x3]
    a0 = x[:, 0].reshape(n_tok, two_c).astype(cdt)
    a1 = x[:, 1].reshape(n_tok, two_c).astype(cdt)

    if two_c <= 256:
        # Fused contraction: one K=4C matmul (fills the 256-deep v6e/v7x MXU,
        # avoids the (M,2C) f32 partial-sum add; on v5e the K split is done
        # inside the MXU with in-array accumulation).
        a = jnp.concatenate([a0, a1], axis=-1)                    # (n_tok, 4C)
        y = jnp.dot(a, w_ref[...], preferred_element_type=jnp.float32)
    else:
        # Large C: two K=2C matmuls accumulated in f32 (no (M,4C) temporary).
        y = jnp.dot(a0, w_ref[0:two_c, :], preferred_element_type=jnp.float32)
        y = y + jnp.dot(a1, w_ref[two_c:2 * two_c, :],
                        preferred_element_type=jnp.float32)

    # Post-LayerNorm in f32, single-pass statistics.
    mean = jnp.mean(y, axis=-1, keepdims=True)
    msq = jnp.mean(y * y, axis=-1, keepdims=True)
    var = jnp.maximum(msq - mean * mean, 0.0)
    y_norm = (y - mean) * jax.lax.rsqrt(var + LN_EPS)
    o_ref[...] = (y_norm * g_ref[...] + b_ref[...]).astype(o_ref.dtype)


def _default_block_tokens(two_c):
    # Small C: HBM-bound -> big tiles (v5e/v6e have 128 MiB VMEM).
    # Large C: MXU-bound -> smaller tiles so f32 LN temporaries + weights fit
    # comfortably inside v7x's 64 MiB VMEM.
    if two_c <= 256:
        return 2048
    if two_c < 1024:
        return 1024
    return 512


def _pick_row_tile(R, wh, block_tokens):
    """Rows of the (R, 2, wh, 2C) view per block.

    Guarantees tile_tokens = t_r*wh is a multiple of 16 (unmasked bf16 stores,
    layout-friendly sublane packing) unless a single block covers the whole
    array (full-extent blocks are always legal).  Prefers an even number of
    grid steps so v7x can split the "parallel" axis across its 2 TensorCores.
    """
    g = 16 // math.gcd(wh, 16)       # smallest row step with (t_r*wh) % 16 == 0
    if R * wh <= block_tokens or R < g:
        return R                     # one full-extent block
    max_rows = (R // g) * g
    t_r = min(max_rows, max(g, (block_tokens // (wh * g)) * g))
    n = -(-R // t_r)
    if n > 1 and n % 2 == 1:
        # Nudge to an even tile count (one extra, slightly smaller, tile).
        t_alt = max(g, ((-(-R // (n + 1))) // g) * g)
        t_alt = min(t_alt, max_rows)
        if (-(-R // t_alt)) % 2 == 0:
            t_r = t_alt
    return t_r


def _vmem_limit_bytes():
    mib = 1024 * 1024
    try:
        cap = int(pltpu.get_tpu_info().vmem_capacity_bytes)
    except Exception:
        cap = 64 * mib               # conservative (v7x-sized) fallback
    # Leave ~16 MiB headroom for Mosaic internal scratch; cap at 112 MiB.
    return int(max(32 * mib, min(cap - 16 * mib, 112 * mib)))


def patch_merging_forward(x, H, W, w_reduction, ln_gamma, ln_beta, *,
                          block_tokens=None, compute_dtype=jnp.bfloat16):
    """PatchMerging.forward (postnorm=True).

    Args:
      x: (B, H*W, C) input features.
      w_reduction: (4C, 2C) weight of nn.Linear(4*dim, 2*dim, bias=False),
                   stored (in, out), rows ordered for the [x0,x1,x2,x3] concat
                   exactly like the PyTorch module.
      ln_gamma, ln_beta: (2C,) LayerNorm affine params.
    Returns:
      (B, ceil(H/2)*ceil(W/2), 2C), dtype == x.dtype.
    """
    B, L, C = x.shape
    assert L == H * W, "input feature has wrong size"
    two_c = 2 * C
    assert w_reduction.shape == (4 * C, two_c)

    # Spatial padding only for odd H/W (matches the module); everything else
    # below is pure views.
    x = x.reshape(B, H, W, C)
    pad_h, pad_w = H % 2, W % 2
    if pad_h or pad_w:
        # TODO(synk): fuse this 1-row/col zero pad into the kernel boundary
        # blocks instead of rewriting the whole activation in HBM.
        x = jnp.pad(x, ((0, 0), (0, pad_h), (0, pad_w), (0, 0)))
    Hp, Wp = H + pad_h, W + pad_w
    hh, wh = Hp // 2, Wp // 2
    Lo = hh * wh
    R = B * hh
    n_tok = R * wh  # == B * Lo

    # Pure view: row r = one output row; axis 1 = input-row parity h2; last
    # axis packs the two horizontally adjacent pixels' channels (2C).
    x4 = x.reshape(R, 2, wh, two_c)

    # Permute weight rows to match the memory layout above:
    #   h2=0 half of a token = [x0 | x2] -> rows [0:C] ++ [2C:3C]
    #   h2=1 half of a token = [x1 | x3] -> rows [C:2C] ++ [3C:4C]
    w = w_reduction
    w_fused = jnp.concatenate(
        [w[0:C], w[2 * C:3 * C], w[C:2 * C], w[3 * C:4 * C]],
        axis=0).astype(compute_dtype)                    # (4C, 2C)
    gamma2d = ln_gamma.reshape(1, two_c).astype(jnp.float32)
    beta2d = ln_beta.reshape(1, two_c).astype(jnp.float32)

    if block_tokens is None:
        block_tokens = _default_block_tokens(two_c)
    t_r = _pick_row_tile(R, wh, block_tokens)
    tile_tokens = t_r * wh
    num_tiles = pl.cdiv(R, t_r)

    itemsize = jnp.dtype(x.dtype).itemsize
    w_itemsize = jnp.dtype(compute_dtype).itemsize
    cost = pl.CostEstimate(
        flops=2 * n_tok * (4 * C) * two_c,
        transcendentals=n_tok,
        bytes_accessed=(x4.size * itemsize
                        + w_fused.size * w_itemsize
                        + 2 * two_c * 4
                        + n_tok * two_c * itemsize),
    )

    out_flat = pl.pallas_call(
        _merge_reduce_norm_kernel,
        out_shape=jax.ShapeDtypeStruct((n_tok, two_c), x.dtype),
        grid_spec=pltpu.PrefetchScalarGridSpec(
            num_scalar_prefetch=0,
            grid=(num_tiles,),
            in_specs=[
                # Single contiguous block carrying BOTH row parities.
                pl.BlockSpec((t_r, 2, wh, two_c), lambda i: (i, 0, 0, 0)),
                pl.BlockSpec((4 * C, two_c), lambda i: (0, 0)),
                pl.BlockSpec((1, two_c), lambda i: (0, 0)),
                pl.BlockSpec((1, two_c), lambda i: (0, 0)),
            ],
            out_specs=pl.BlockSpec((tile_tokens, two_c), lambda i: (i, 0)),
        ),
        compiler_params=pltpu.CompilerParams(
            dimension_semantics=("parallel",),
            vmem_limit_bytes=_vmem_limit_bytes()),
        cost_estimate=cost,
    )(x4, w_fused, gamma2d, beta2d)

    return out_flat.reshape(B, Lo, two_c)


def patch_merging_reference(x, H, W, w_reduction, ln_gamma, ln_beta):
    """Pure-JAX f32 reference matching the PyTorch semantics (postnorm=True)."""
    B, L, C = x.shape
    x = x.astype(jnp.float32).reshape(B, H, W, C)
    pad_h, pad_w = H % 2, W % 2
    if pad_h or pad_w:
        x = jnp.pad(x, ((0, 0), (0, pad_h), (0, pad_w), (0, 0)))
    x0 = x[:, 0::2, 0::2, :]
    x1 = x[:, 1::2, 0::2, :]
    x2 = x[:, 0::2, 1::2, :]
    x3 = x[:, 1::2, 1::2, :]
    x = jnp.concatenate([x0, x1, x2, x3], axis=-1).reshape(B, -1, 4 * C)
    y = jnp.einsum("blk,ko->blo", x, w_reduction.astype(jnp.float32))
    mean = jnp.mean(y, axis=-1, keepdims=True)
    var = jnp.mean((y - mean) ** 2, axis=-1, keepdims=True)
    y = (y - mean) / jnp.sqrt(var + LN_EPS)
    return y * ln_gamma.astype(jnp.float32) + ln_beta.astype(jnp.float32)


if __name__ == "__main__":
    key = jax.random.PRNGKey(0)
    k_x, k_w, k_g, k_b = jax.random.split(key, 4)

    B, dim = 2, 64  # 2C = 128 -> lane-dense output

    # nn.Linear(4*dim, 2*dim, bias=False) weight stored as (in, out); bf16 so
    # the MXU runs bf16 with f32 accumulation.
    w_reduction = (jax.random.normal(k_w, (4 * dim, 2 * dim), jnp.float32)
                   * (1.0 / jnp.sqrt(4.0 * dim))).astype(jnp.bfloat16)
    # nn.LayerNorm(2*dim) affine params (kept in f32 inside the kernel).
    ln_gamma = 1.0 + 0.1 * jax.random.normal(k_g, (2 * dim,), jnp.float32)
    ln_beta = 0.1 * jax.random.normal(k_b, (2 * dim,), jnp.float32)

    # (16,16): even dims, single block.     (15,15): odd dims -> padding path.
    # (64,64, bt=512): multi-tile even grid. (45,45, bt=256): padding + partial
    # last block via the cdiv grid.
    cases = [(16, 16, None), (15, 15, None), (64, 64, 512), (45, 45, 256)]
    for (H, W, bt) in cases:
        x = jax.random.normal(k_x, (B, H * W, dim),
                              jnp.float32).astype(jnp.bfloat16)
        kwargs = {} if bt is None else {"block_tokens": bt}
        out = patch_merging_forward(x, H, W, w_reduction, ln_gamma, ln_beta,
                                    **kwargs)
        out = jax.block_until_ready(out)

        ref = patch_merging_reference(x, H, W, w_reduction, ln_gamma, ln_beta)
        Hp, Wp = H + H % 2, W + W % 2
        assert out.shape == (B, (Hp // 2) * (Wp // 2), 2 * dim), out.shape
        assert out.dtype == x.dtype, out.dtype
        max_err = jnp.max(jnp.abs(out.astype(jnp.float32) - ref))
        assert max_err < 5e-2, f"H={H} W={W}: max abs err {max_err}"

    print("KERNEL_OK")
</pallas_src>

<mosaic_0001>
module attributes {stable_mosaic.version = 11 : i64} {
  func.func @_merge_reduce_norm_kernel(%arg0: i32, %arg1: memref<16x2x8x128xbf16, #tpu.memory_space<vmem>>, %arg2: memref<256x128xbf16, #tpu.memory_space<vmem>>, %arg3: memref<1x128xf32, #tpu.memory_space<vmem>>, %arg4: memref<1x128xf32, #tpu.memory_space<vmem>>, %arg5: memref<128x128xbf16, #tpu.memory_space<vmem>>) attributes {dimension_semantics = [#tpu.dimension_semantics<parallel>], iteration_bounds = array<i64: 1>, scalar_prefetch = 0 : i64, scratch_operands = 0 : i64, tpu.core_type = #tpu.core_type<tc>, window_params = [{transform_indices = @transform_0, window_bounds = array<i64: 16, 2, 8, 128>}, {pipeline_mode = #tpu.pipeline_mode<synchronous>, transform_indices = @transform_1, window_bounds = array<i64: 256, 128>}, {pipeline_mode = #tpu.pipeline_mode<synchronous>, transform_indices = @transform_2, window_bounds = array<i64: 1, 128>}, {pipeline_mode = #tpu.pipeline_mode<synchronous>, transform_indices = @transform_3, window_bounds = array<i64: 1, 128>}, {transform_indices = @transform_4, window_bounds = array<i64: 128, 128>}]} {
    %c0 = arith.constant 0 : index
    %c0_0 = arith.constant 0 : index
    %c0_1 = arith.constant 0 : index
    %c0_2 = arith.constant 0 : index
    %0 = vector.load %arg1[%c0, %c0_0, %c0_1, %c0_2] : memref<16x2x8x128xbf16, #tpu.memory_space<vmem>>, vector<16x2x8x128xbf16>
    %1 = vector.extract_strided_slice %0 {offsets = [0, 0, 0, 0], sizes = [16, 1, 8, 128], strides = [1, 1, 1, 1]} : vector<16x2x8x128xbf16> to vector<16x1x8x128xbf16>
    %2 = vector.shape_cast %1 : vector<16x1x8x128xbf16> to vector<16x8x128xbf16>
    %3 = vector.shape_cast %2 : vector<16x8x128xbf16> to vector<128x128xbf16>
    %4 = vector.extract_strided_slice %0 {offsets = [0, 1, 0, 0], sizes = [16, 1, 8, 128], strides = [1, 1, 1, 1]} : vector<16x2x8x128xbf16> to vector<16x1x8x128xbf16>
    %5 = vector.shape_cast %4 : vector<16x1x8x128xbf16> to vector<16x8x128xbf16>
    %6 = vector.shape_cast %5 : vector<16x8x128xbf16> to vector<128x128xbf16>
    %7 = tpu.concatenate %3, %6 in 1 : vector<128x128xbf16>, vector<128x128xbf16> -> vector<128x256xbf16>
    %c0_3 = arith.constant 0 : index
    %c0_4 = arith.constant 0 : index
    %8 = vector.load %arg2[%c0_3, %c0_4] : memref<256x128xbf16, #tpu.memory_space<vmem>>, vector<256x128xbf16>
    %cst = arith.constant dense<0.000000e+00> : vector<128x128xf32>
    %9 = tpu.matmul %7, %8, %cst {dimension_numbers = #tpu.dot_dimension_numbers<[1], [0], [0], [1], [0, 0, 1, 1], [], []>} : vector<128x256xbf16>, vector<256x128xbf16>, vector<128x128xf32> -> vector<128x128xf32>
    %cst_5 = arith.constant dense<0.000000e+00> : vector<128xf32>
    %10 = vector.multi_reduction <add>, %9, %cst_5 [1] : vector<128x128xf32> to vector<128xf32>
    %11 = vector.shape_cast %10 : vector<128xf32> to vector<128x1xf32>
    %cst_6 = arith.constant 1.280000e+02 : f32
    %12 = vector.broadcast %cst_6 : f32 to vector<128x1xf32>
    %13 = arith.divf %11, %12 : vector<128x1xf32>
    %14 = arith.mulf %9, %9 : vector<128x128xf32>
    %cst_7 = arith.constant dense<0.000000e+00> : vector<128xf32>
    %15 = vector.multi_reduction <add>, %14, %cst_7 [1] : vector<128x128xf32> to vector<128xf32>
    %16 = vector.shape_cast %15 : vector<128xf32> to vector<128x1xf32>
    %cst_8 = arith.constant 1.280000e+02 : f32
    %17 = vector.broadcast %cst_8 : f32 to vector<128x1xf32>
    %18 = arith.divf %16, %17 : vector<128x1xf32>
    %19 = arith.mulf %13, %13 : vector<128x1xf32>
    %20 = arith.subf %18, %19 : vector<128x1xf32>
    %cst_9 = arith.constant 0.000000e+00 : f32
    %21 = vector.broadcast %cst_9 : f32 to vector<128x1xf32>
    %22 = arith.maximumf %20, %21 : vector<128x1xf32>
    %23 = vector.broadcast %13 : vector<128x1xf32> to vector<128x128xf32>
    %24 = arith.subf %9, %23 : vector<128x128xf32>
    %cst_10 = arith.constant 9.99999974E-6 : f32
    %25 = vector.broadcast %cst_10 : f32 to vector<128x1xf32>
    %26 = arith.addf %22, %25 : vector<128x1xf32>
    %27 = math.rsqrt %26 : vector<128x1xf32>
    %28 = vector.broadcast %27 : vector<128x1xf32> to vector<128x128xf32>
    %29 = arith.mulf %24, %28 : vector<128x128xf32>
    %c0_11 = arith.constant 0 : index
    %c0_12 = arith.constant 0 : index
    %30 = vector.load %arg3[%c0_11, %c0_12] : memref<1x128xf32, #tpu.memory_space<vmem>>, vector<1x128xf32>
    %31 = vector.broadcast %30 : vector<1x128xf32> to vector<128x128xf32>
    %32 = arith.mulf %29, %31 : vector<128x128xf32>
    %c0_13 = arith.constant 0 : index
    %c0_14 = arith.constant 0 : index
    %33 = vector.load %arg4[%c0_13, %c0_14] : memref<1x128xf32, #tpu.memory_space<vmem>>, vector<1x128xf32>
    %34 = vector.broadcast %33 : vector<1x128xf32> to vector<128x128xf32>
    %35 = arith.addf %32, %34 : vector<128x128xf32>
    %36 = arith.truncf %35 : vector<128x128xf32> to vector<128x128xbf16>
    %c0_15 = arith.constant 0 : index
    %c0_16 = arith.constant 0 : index
    %37 = vector.load %arg5[%c0_15, %c0_16] : memref<128x128xbf16, #tpu.memory_space<vmem>>, vector<128x128xbf16>
    tpu.vector_store %arg5[%c0_15, %c0_16], %36 {strides = array<i32>} : memref<128x128xbf16, #tpu.memory_space<vmem>>, vector<128x128xbf16>,
    return
  }
  func.func @transform_0(%arg0: i32) -> (i32, i32, i32, i32) {
    %c0_i32 = arith.constant 0 : i32
    %c0_i32_0 = arith.constant 0 : i32
    %c0_i32_1 = arith.constant 0 : i32
    %c0_i32_2 = arith.constant 0 : i32
    return %arg0, %c0_i32, %c0_i32_0, %c0_i32_1 : i32, i32, i32, i32
  }
  func.func @transform_1(%arg0: i32) -> (i32, i32) {
    %c0_i32 = arith.constant 0 : i32
    %c0_i32_0 = arith.constant 0 : i32
    %c0_i32_1 = arith.constant 0 : i32
    return %c0_i32, %c0_i32_0 : i32, i32
  }
  func.func @transform_2(%arg0: i32) -> (i32, i32) {
    %c0_i32 = arith.constant 0 : i32
    %c0_i32_0 = arith.constant 0 : i32
    %c0_i32_1 = arith.constant 0 : i32
    return %c0_i32, %c0_i32_0 : i32, i32
  }
  func.func @transform_3(%arg0: i32) -> (i32, i32) {
    %c0_i32 = arith.constant 0 : i32
    %c0_i32_0 = arith.constant 0 : i32
    %c0_i32_1 = arith.constant 0 : i32
    return %c0_i32, %c0_i32_0 : i32, i32
  }
  func.func @transform_4(%arg0: i32) -> (i32, i32) {
    %c0_i32 = arith.constant 0 : i32
    %c0_i32_0 = arith.constant 0 : i32
    return %arg0, %c0_i32 : i32, i32
  }
}

</mosaic_0001>

<llo_original>
// kernel: tpu_custom_call.1
$region0: #{tpu_custom_call.1}
  #allocation0 [shape = 'u32[]', space=smem, size = 0x4, offset = 0x4, fixed_abs, tag = 'smem constant byte address 0x4 - core index']
  #allocation1 [shape = 'u32[144,128]{1,0:T(1,128)}', space=vmem, size = 0x12000, scoped, tag = 'internal scratch']
  %s0 = inlined_call_operand.hbm [shape: bf16[16,2,8,128], index: 0, kind: input, shape index: {}]
  %s1 = inlined_call_operand.hbm [shape: bf16[256,128], index: 1, kind: input, shape index: {}]
  %s2 = inlined_call_operand.vmem [shape: f32[1,128], index: 2, kind: input, shape index: {}]
  %s3 = inlined_call_operand.vmem [shape: f32[1,128], index: 3, kind: input, shape index: {}]
  %s4 = inlined_call_operand.hbm [shape: bf16[128,128], index: 4, kind: output, shape index: {}]
  %s5 = sld [smem:[#allocation0]]
  $region34: #{tpu_custom_call.1} parent=0
    _
  %s7 = ssub.s32 1, %s5
  %s8 = scalar_select 0, %s7, %s5
  $region1: #{tpu_custom_call.1} parent=0
    #allocation2 [shape = 'u8[65536]{0}', space=vmem, size = 0x10000, scoped, tag = 'input window, operand 0, single buffered']
    #allocation3 [shape = 's32[1]{0}', space=sflag, size = 0x4, scoped, tag = 'scoped memory for tpu_custom_call.1']
    #allocation4 [shape = 's32[1]{0}', space=sflag, size = 0x4, scoped, tag = 'scoped memory for tpu_custom_call.1']
    #allocation5 [shape = 'u8[65536]{0}', space=vmem, size = 0x10000, scoped, tag = 'input window, operand 1, single buffered']
    #allocation6 [shape = 's32[1]{0}', space=sflag, size = 0x4, scoped, tag = 'scoped memory for tpu_custom_call.1']
    #allocation7 [shape = 'u8[32768]{0}', space=vmem, size = 0x8000, scoped, tag = 'output window, operand 0, single buffered']
    %9 = vsyncpa [#allocation3], 0
    %10 = vsyncpa [#allocation6], 0
    %11 = vsyncpa [#allocation4], 0
    // Predicated region
    $region2: #{tpu_custom_call.1} parent=1 // pred_check
      _
    $region3: #{tpu_custom_call.1} parent=1 // pred_check_branch
      %13 = sbr.rel (0) target = $region5
    $region4: #{tpu_custom_call.1} parent=1 // pred_region
      %s15 = ssub.s32 2048, 2048
      %16 = vsyncadd [#allocation3], %s15
      %s17 = sshll.u32 [#allocation2], 4
      %s18 = int_to_ptr.vmem [resolvable:$true] %s17
      %23 = dma.hbm_to_vmem [thread:$0]  %s0, 2048, %s18, [#allocation3], 64, 64, 4
    $region5: #{tpu_custom_call.1} parent=1 // pred_fallthru
      _
    // Predicated region
    $region6: #{tpu_custom_call.1} parent=1 // pred_check
      _
    $region7: #{tpu_custom_call.1} parent=1 // pred_check_branch
      %25 = sbr.rel (0) target = $region9
    $region8: #{tpu_custom_call.1} parent=1 // pred_region
      %s27 = ssub.s32 2048, 2048
      %28 = vsyncadd [#allocation6], %s27
      %s29 = sshll.u32 [#allocation5], 4
      %s30 = int_to_ptr.vmem [resolvable:$true] %s29
      %35 = dma.hbm_to_vmem [thread:$0]  %s1, 2048, %s30, [#allocation6], 64, 64, 4
    $region9: #{tpu_custom_call.1} parent=1 // pred_fallthru
      _
    // Predicated region
    $region10: #{tpu_custom_call.1} parent=1 // pred_check
      _
    $region11: #{tpu_custom_call.1} parent=1 // pred_check_branch
      %37 = sbr.rel (0) target = $region13
    $region12: #{tpu_custom_call.1} parent=1 // pred_region
      _
    $region13: #{tpu_custom_call.1} parent=1 // pred_fallthru
      _
    // Predicated region
    $region14: #{tpu_custom_call.1} parent=1 // pred_check
      _
    $region15: #{tpu_custom_call.1} parent=1 // pred_check_branch
      %39 = sbr.rel (0) target = $region17
    $region16: #{tpu_custom_call.1} parent=1 // pred_region
      _
    $region17: #{tpu_custom_call.1} parent=1 // pred_fallthru
      _
    // Predicated region
    $region18: #{tpu_custom_call.1} parent=1 // pred_check
      _
    $region19: #{tpu_custom_call.1} parent=1 // pred_check_branch
      %41 = sbr.rel (0) target = $region21
    $region20: #{tpu_custom_call.1} parent=1 // pred_region
      %42 = dma.done [#allocation3], 2048
    $region21: #{tpu_custom_call.1} parent=1 // pred_fallthru
      _
    // Predicated region
    $region22: #{tpu_custom_call.1} parent=1 // pred_check
      _
    $region23: #{tpu_custom_call.1} parent=1 // pred_check_branch
      %44 = sbr.rel (0) target = $region25
    $region24: #{tpu_custom_call.1} parent=1 // pred_region
      %45 = dma.done [#allocation6], 2048
    $region25: #{tpu_custom_call.1} parent=1 // pred_fallthru
      _
    %v47 = vld [vmem:[#allocation2] sm:$0xf]
    %v48 = vld [vmem:[#allocation2 + $0x4] sm:$0xf]
    %v49 = vld [vmem:[#allocation2 + $0x8] sm:$0xf]
    %v50 = vld [vmem:[#allocation2 + $0xc] sm:$0xf]
    %v51 = vld [vmem:[#allocation2 + $0x10] sm:$0xf]
    %v52 = vld [vmem:[#allocation2 + $0x14] sm:$0xf]
    %v53 = vld [vmem:[#allocation2 + $0x18] sm:$0xf]
    %v54 = vld [vmem:[#allocation2 + $0x1c] sm:$0xf]
    %v55 = vld [vmem:[#allocation2 + $0x20] sm:$0xf]
    %v56 = vld [vmem:[#allocation2 + $0x24] sm:$0xf]
    %v57 = vld [vmem:[#allocation2 + $0x28] sm:$0xf]
    %v58 = vld [vmem:[#allocation2 + $0x2c] sm:$0xf]
    %v59 = vld [vmem:[#allocation2 + $0x30] sm:$0xf]
    %v60 = vld [vmem:[#allocation2 + $0x34] sm:$0xf]
    %v61 = vld [vmem:[#allocation2 + $0x38] sm:$0xf]
    %v62 = vld [vmem:[#allocation2 + $0x3c] sm:$0xf]
    %v63 = vld [vmem:[#allocation2 + $0x40] sm:$0xf]
    %v64 = vld [vmem:[#allocation2 + $0x44] sm:$0xf]
    %v65 = vld [vmem:[#allocation2 + $0x48] sm:$0xf]
    %v66 = vld [vmem:[#allocation2 + $0x4c] sm:$0xf]
    %v67 = vld [vmem:[#allocation2 + $0x50] sm:$0xf]
    %v68 = vld [vmem:[#allocation2 + $0x54] sm:$0xf]
    %v69 = vld [vmem:[#allocation2 + $0x58] sm:$0xf]
    %v70 = vld [vmem:[#allocation2 + $0x5c] sm:$0xf]
    %v71 = vld [vmem:[#allocation2 + $0x60] sm:$0xf]
    %v72 = vld [vmem:[#allocation2 + $0x64] sm:$0xf]
    %v73 = vld [vmem:[#allocation2 + $0x68] sm:$0xf]
    %v74 = vld [vmem:[#allocation2 + $0x6c] sm:$0xf]
    %v75 = vld [vmem:[#allocation2 + $0x70] sm:$0xf]
    %v76 = vld [vmem:[#allocation2 + $0x74] sm:$0xf]
    %v77 = vld [vmem:[#allocation2 + $0x78] sm:$0xf]
    %v78 = vld [vmem:[#allocation2 + $0x7c] sm:$0xf]
    %v95 = vunpack.c.l.b16 %v47
    %v96 = vunpack.c.l.b16 %v49
    %v97 = vunpack.c.l.b16 %v51
    %v98 = vunpack.c.l.b16 %v53
    %v99 = vunpack.c.l.b16 %v55
    %v100 = vunpack.c.l.b16 %v57
    %v101 = vunpack.c.l.b16 %v59
    %v102 = vunpack.c.l.b16 %v61
    %v103 = vunpack.c.l.b16 %v63
    %v104 = vunpack.c.l.b16 %v65
    %v105 = vunpack.c.l.b16 %v67
    %v106 = vunpack.c.l.b16 %v69
    %v107 = vunpack.c.l.b16 %v71
    %v108 = vunpack.c.l.b16 %v73
    %v109 = vunpack.c.l.b16 %v75
    %v110 = vunpack.c.l.b16 %v77
    %v111 = vpack.c.b16 %v96, %v95
    %v112 = vpack.c.b16 %v98, %v97
    %v113 = vpack.c.b16 %v100, %v99
    %v114 = vpack.c.b16 %v102, %v101
    %v115 = vpack.c.b16 %v104, %v103
    %v116 = vpack.c.b16 %v106, %v105
    %v117 = vpack.c.b16 %v108, %v107
    %v118 = vpack.c.b16 %v110, %v109
    %v143 = vunpack.c.l.b16 %v48
    %v144 = vunpack.c.l.b16 %v50
    %v145 = vunpack.c.l.b16 %v52
    %v146 = vunpack.c.l.b16 %v54
    %v147 = vunpack.c.l.b16 %v56
    %v148 = vunpack.c.l.b16 %v58
    %v149 = vunpack.c.l.b16 %v60
    %v150 = vunpack.c.l.b16 %v62
    %v151 = vunpack.c.l.b16 %v64
    %v152 = vunpack.c.l.b16 %v66
    %v153 = vunpack.c.l.b16 %v68
    %v154 = vunpack.c.l.b16 %v70
    %v155 = vunpack.c.l.b16 %v72
    %v156 = vunpack.c.l.b16 %v74
    %v157 = vunpack.c.l.b16 %v76
    %v158 = vunpack.c.l.b16 %v78
    %v159 = vpack.c.b16 %v144, %v143
    %v160 = vpack.c.b16 %v146, %v145
    %v161 = vpack.c.b16 %v148, %v147
    %v162 = vpack.c.b16 %v150, %v149
    %v163 = vpack.c.b16 %v152, %v151
    %v164 = vpack.c.b16 %v154, %v153
    %v165 = vpack.c.b16 %v156, %v155
    %v166 = vpack.c.b16 %v158, %v157
    %v175 = vld [vmem:[#allocation5] sm:$0xf]
    %v176 = vld [vmem:[#allocation5 + $0x4] sm:$0xf]
    %v177 = vld [vmem:[#allocation5 + $0x8] sm:$0xf]
    %v178 = vld [vmem:[#allocation5 + $0xc] sm:$0xf]
    %v179 = vld [vmem:[#allocation5 + $0x10] sm:$0xf]
    %v180 = vld [vmem:[#allocation5 + $0x14] sm:$0xf]
    %v181 = vld [vmem:[#allocation5 + $0x18] sm:$0xf]
    %v182 = vld [vmem:[#allocation5 + $0x1c] sm:$0xf]
    %v183 = vld [vmem:[#allocation5 + $0x20] sm:$0xf]
    %v184 = vld [vmem:[#allocation5 + $0x24] sm:$0xf]
    %v185 = vld [vmem:[#allocation5 + $0x28] sm:$0xf]
    %v186 = vld [vmem:[#allocation5 + $0x2c] sm:$0xf]
    %v187 = vld [vmem:[#allocation5 + $0x30] sm:$0xf]
    %v188 = vld [vmem:[#allocation5 + $0x34] sm:$0xf]
    %v189 = vld [vmem:[#allocation5 + $0x38] sm:$0xf]
    %v190 = vld [vmem:[#allocation5 + $0x3c] sm:$0xf]
    %v191 = vld [vmem:[#allocation5 + $0x40] sm:$0xf]
    %v192 = vld [vmem:[#allocation5 + $0x44] sm:$0xf]
    %v193 = vld [vmem:[#allocation5 + $0x48] sm:$0xf]
    %v194 = vld [vmem:[#allocation5 + $0x4c] sm:$0xf]
    %v195 = vld [vmem:[#allocation5 + $0x50] sm:$0xf]
    %v196 = vld [vmem:[#allocation5 + $0x54] sm:$0xf]
    %v197 = vld [vmem:[#allocation5 + $0x58] sm:$0xf]
    %v198 = vld [vmem:[#allocation5 + $0x5c] sm:$0xf]
    %v199 = vld [vmem:[#allocation5 + $0x60] sm:$0xf]
    %v200 = vld [vmem:[#allocation5 + $0x64] sm:$0xf]
    %v201 = vld [vmem:[#allocation5 + $0x68] sm:$0xf]
    %v202 = vld [vmem:[#allocation5 + $0x6c] sm:$0xf]
    %v203 = vld [vmem:[#allocation5 + $0x70] sm:$0xf]
    %v204 = vld [vmem:[#allocation5 + $0x74] sm:$0xf]
    %v205 = vld [vmem:[#allocation5 + $0x78] sm:$0xf]
    %v206 = vld [vmem:[#allocation5 + $0x7c] sm:$0xf]
    %v239 = vunpack.c.l.b16 %v175
    %v240 = vunpack.c.l.b16 %v176
    %v241 = vunpack.c.l.b16 %v177
    %v242 = vunpack.c.l.b16 %v178
    %v243 = vunpack.c.l.b16 %v179
    %v244 = vunpack.c.l.b16 %v180
    %v245 = vunpack.c.l.b16 %v181
    %v246 = vunpack.c.l.b16 %v182
    %v247 = vunpack.c.l.b16 %v183
    %v248 = vunpack.c.l.b16 %v184
    %v249 = vunpack.c.l.b16 %v185
    %v250 = vunpack.c.l.b16 %v186
    %v251 = vunpack.c.l.b16 %v187
    %v252 = vunpack.c.l.b16 %v188
    %v253 = vunpack.c.l.b16 %v189
    %v254 = vunpack.c.l.b16 %v190
    %v255 = vunpack.c.l.b16 %v191
    %v256 = vunpack.c.l.b16 %v192
    %v257 = vunpack.c.l.b16 %v193
    %v258 = vunpack.c.l.b16 %v194
    %v259 = vunpack.c.l.b16 %v195
    %v260 = vunpack.c.l.b16 %v196
    %v261 = vunpack.c.l.b16 %v197
    %v262 = vunpack.c.l.b16 %v198
    %v263 = vunpack.c.l.b16 %v199
    %v264 = vunpack.c.l.b16 %v200
    %v265 = vunpack.c.l.b16 %v201
    %v266 = vunpack.c.l.b16 %v202
    %v267 = vunpack.c.l.b16 %v203
    %v268 = vunpack.c.l.b16 %v204
    %v269 = vunpack.c.l.b16 %v205
    %v270 = vunpack.c.l.b16 %v206
    %v271 = vpack.c.b16 %v240, %v239
    %v272 = vpack.c.b16 %v242, %v241
    %v273 = vpack.c.b16 %v244, %v243
    %v274 = vpack.c.b16 %v246, %v245
    %v275 = vpack.c.b16 %v248, %v247
    %v276 = vpack.c.b16 %v250, %v249
    %v277 = vpack.c.b16 %v252, %v251
    %v278 = vpack.c.b16 %v254, %v253
    %v279 = vpack.c.b16 %v256, %v255
    %v280 = vpack.c.b16 %v258, %v257
    %v281 = vpack.c.b16 %v260, %v259
    %v282 = vpack.c.b16 %v262, %v261
    %v283 = vpack.c.b16 %v264, %v263
    %v284 = vpack.c.b16 %v266, %v265
    %v285 = vpack.c.b16 %v268, %v267
    %v286 = vpack.c.b16 %v270, %v269
    %303 = vmatprep.subr.bf16.mxu0 0
    %304 = vmatpush1.bf16.msra.mxu0 %v278
    %305 = vmatprep.subr.bf16.mxu0 0
    %306 = vmatpush1.bf16.msra.mxu0 %v277
    %307 = vmatprep.subr.bf16.mxu0 0
    %308 = vmatpush1.bf16.msra.mxu0 %v276
    %309 = vmatprep.subr.bf16.mxu0 0
    %310 = vmatpush1.bf16.msra.mxu0 %v275
    %311 = vmatprep.subr.bf16.mxu0 0
    %312 = vmatpush1.bf16.msra.mxu0 %v274
    %313 = vmatprep.subr.bf16.mxu0 0
    %314 = vmatpush1.bf16.msra.mxu0 %v273
    %315 = vmatprep.subr.bf16.mxu0 0
    %316 = vmatpush1.bf16.msra.mxu0 %v272
    %317 = vmatprep.subr.bf16.mxu0 0
    %318 = vmatpush1.bf16.msra.mxu0 %v271
    %319 = vmatprep.subr.bf16.mxu0 0
    %320 = vmatpush2.bf16.msra.mxu0 %v286
    %321 = vmatprep.subr.bf16.mxu0 0
    %322 = vmatpush2.bf16.msra.mxu0 %v285
    %323 = vmatprep.subr.bf16.mxu0 0
    %324 = vmatpush2.bf16.msra.mxu0 %v284
    %325 = vmatprep.subr.bf16.mxu0 0
    %326 = vmatpush2.bf16.msra.mxu0 %v283
    %327 = vmatprep.subr.bf16.mxu0 0
    %328 = vmatpush2.bf16.msra.mxu0 %v282
    %329 = vmatprep.subr.bf16.mxu0 0
    %330 = vmatpush2.bf16.msra.mxu0 %v281
    %331 = vmatprep.subr.bf16.mxu0 0
    %332 = vmatpush2.bf16.msra.mxu0 %v280
    %333 = vmatprep.subr.bf16.mxu0 0
    %334 = vmatpush2.bf16.msra.mxu0 %v279
    %335 = vmatprep.mubr.bf16.mxu0 %v159
    %336 = vmatmul.mubr.bf16.gmra.mxu0 %v111
    %v337 = vpop.f32.mrf.mxu0
    %v338 = vadd.f32 0.0, %v337
    %v339 = vpop.f32.mrf.mxu0
    %v340 = vpop.f32.mrf.mxu0
    %v341 = vadd.f32 0.0, %v340
    %v342 = vpop.f32.mrf.mxu0
    %343 = vmatprep.mubr.bf16.mxu0 %v160
    %344 = vmatmul.mubr.bf16.gmra.mxu0 %v112
    %v345 = vpop.f32.mrf.mxu0
    %v346 = vadd.f32 0.0, %v345
    %v347 = vpop.f32.mrf.mxu0
    %v348 = vpop.f32.mrf.mxu0
    %v349 = vadd.f32 0.0, %v348
    %v350 = vpop.f32.mrf.mxu0
    %351 = vmatprep.mubr.bf16.mxu0 %v161
    %352 = vmatmul.mubr.bf16.gmra.mxu0 %v113
    %v353 = vpop.f32.mrf.mxu0
    %v354 = vadd.f32 0.0, %v353
    %v355 = vpop.f32.mrf.mxu0
    %v356 = vpop.f32.mrf.mxu0
    %v357 = vadd.f32 0.0, %v356
    %v358 = vpop.f32.mrf.mxu0
    %359 = vmatprep.mubr.bf16.mxu0 %v162
    %360 = vmatmul.mubr.bf16.gmra.mxu0 %v114
    %v361 = vpop.f32.mrf.mxu0
    %v362 = vadd.f32 0.0, %v361
    %v363 = vpop.f32.mrf.mxu0
    %v364 = vpop.f32.mrf.mxu0
    %v365 = vadd.f32 0.0, %v364
    %v366 = vpop.f32.mrf.mxu0
    %367 = vmatprep.mubr.bf16.mxu0 %v163
    %368 = vmatmul.mubr.bf16.gmra.mxu0 %v115
    %v369 = vpop.f32.mrf.mxu0
    %v370 = vadd.f32 0.0, %v369
    %v371 = vpop.f32.mrf.mxu0
    %v372 = vpop.f32.mrf.mxu0
    %v373 = vadd.f32 0.0, %v372
    %v374 = vpop.f32.mrf.mxu0
    %375 = vmatprep.mubr.bf16.mxu0 %v164
    %376 = vmatmul.mubr.bf16.gmra.mxu0 %v116
    %v377 = vpop.f32.mrf.mxu0
    %v378 = vadd.f32 0.0, %v377
    %v379 = vpop.f32.mrf.mxu0
    %v380 = vpop.f32.mrf.mxu0
    %v381 = vadd.f32 0.0, %v380
    %v382 = vpop.f32.mrf.mxu0
    %383 = vmatprep.mubr.bf16.mxu0 %v165
    %384 = vmatmul.mubr.bf16.gmra.mxu0 %v117
    %v385 = vpop.f32.mrf.mxu0
    %v386 = vadd.f32 0.0, %v385
    %v387 = vpop.f32.mrf.mxu0
    %v388 = vpop.f32.mrf.mxu0
    %v389 = vadd.f32 0.0, %v388
    %v390 = vpop.f32.mrf.mxu0
    %391 = vmatprep.mubr.bf16.mxu0 %v166
    %392 = vmatmul.mubr.bf16.gmra.mxu0 %v118
    %v393 = vpop.f32.mrf.mxu0
    %v394 = vadd.f32 0.0, %v393
    %v395 = vpop.f32.mrf.mxu0
    %v396 = vpop.f32.mrf.mxu0
    %v397 = vadd.f32 0.0, %v396
    %v398 = vpop.f32.mrf.mxu0
    %399 = vdwg.mxu0
    %400 = vadd.xlane.f32.xlu0 %v338
    %v401 = vpop.xlane.xlu0 %400
    %402 = vadd.xlane.f32.xlu0 %v341
    %v403 = vpop.xlane.xlu0 %402
    %404 = vadd.xlane.f32.xlu0 %v346
    %v405 = vpop.xlane.xlu0 %404
    %406 = vadd.xlane.f32.xlu0 %v349
    %v407 = vpop.xlane.xlu0 %406
    %408 = vadd.xlane.f32.xlu0 %v354
    %v409 = vpop.xlane.xlu0 %408
    %410 = vadd.xlane.f32.xlu0 %v357
    %v411 = vpop.xlane.xlu0 %410
    %412 = vadd.xlane.f32.xlu0 %v362
    %v413 = vpop.xlane.xlu0 %412
    %414 = vadd.xlane.f32.xlu0 %v365
    %v415 = vpop.xlane.xlu0 %414
    %416 = vadd.xlane.f32.xlu0 %v370
    %v417 = vpop.xlane.xlu0 %416
    %418 = vadd.xlane.f32.xlu0 %v373
    %v419 = vpop.xlane.xlu0 %418
    %420 = vadd.xlane.f32.xlu0 %v378
    %v421 = vpop.xlane.xlu0 %420
    %422 = vadd.xlane.f32.xlu0 %v381
    %v423 = vpop.xlane.xlu0 %422
    %424 = vadd.xlane.f32.xlu0 %v386
    %v425 = vpop.xlane.xlu0 %424
    %426 = vadd.xlane.f32.xlu0 %v389
    %v427 = vpop.xlane.xlu0 %426
    %428 = vadd.xlane.f32.xlu0 %v394
    %v429 = vpop.xlane.xlu0 %428
    %430 = vadd.xlane.f32.xlu0 %v397
    %v431 = vpop.xlane.xlu0 %430
    %v432 = vrcp.pop 128.0
    %v433 = vmul.f32 %v401, %v432
    %v434 = vmul.f32 %v403, %v432
    %v435 = vmul.f32 %v405, %v432
    %v436 = vmul.f32 %v407, %v432
    %v437 = vmul.f32 %v409, %v432
    %v438 = vmul.f32 %v411, %v432
    %v439 = vmul.f32 %v413, %v432
    %v440 = vmul.f32 %v415, %v432
    %v441 = vmul.f32 %v417, %v432
    %v442 = vmul.f32 %v419, %v432
    %v443 = vmul.f32 %v421, %v432
    %v444 = vmul.f32 %v423, %v432
    %v445 = vmul.f32 %v425, %v432
    %v446 = vmul.f32 %v427, %v432
    %v447 = vmul.f32 %v429, %v432
    %v448 = vmul.f32 %v431, %v432
    %v449 = vmul.f32 %v338, %v338
    %v450 = vmul.f32 %v341, %v341
    %v451 = vmul.f32 %v346, %v346
    %v452 = vmul.f32 %v349, %v349
    %v453 = vmul.f32 %v354, %v354
    %v454 = vmul.f32 %v357, %v357
    %v455 = vmul.f32 %v362, %v362
    %v456 = vmul.f32 %v365, %v365
    %v457 = vmul.f32 %v370, %v370
    %v458 = vmul.f32 %v373, %v373
    %v459 = vmul.f32 %v378, %v378
    %v460 = vmul.f32 %v381, %v381
    %v461 = vmul.f32 %v386, %v386
    %v462 = vmul.f32 %v389, %v389
    %v463 = vmul.f32 %v394, %v394
    %v464 = vmul.f32 %v397, %v397
    %465 = vadd.xlane.f32.xlu0 %v449
    %v466 = vpop.xlane.xlu0 %465
    %467 = vadd.xlane.f32.xlu0 %v450
    %v468 = vpop.xlane.xlu0 %467
    %469 = vadd.xlane.f32.xlu0 %v451
    %v470 = vpop.xlane.xlu0 %469
    %471 = vadd.xlane.f32.xlu0 %v452
    %v472 = vpop.xlane.xlu0 %471
    %473 = vadd.xlane.f32.xlu0 %v453
    %v474 = vpop.xlane.xlu0 %473
    %475 = vadd.xlane.f32.xlu0 %v454
    %v476 = vpop.xlane.xlu0 %475
    %477 = vadd.xlane.f32.xlu0 %v455
    %v478 = vpop.xlane.xlu0 %477
    %479 = vadd.xlane.f32.xlu0 %v456
    %v480 = vpop.xlane.xlu0 %479
    %481 = vadd.xlane.f32.xlu0 %v457
    %v482 = vpop.xlane.xlu0 %481
    %483 = vadd.xlane.f32.xlu0 %v458
    %v484 = vpop.xlane.xlu0 %483
    %485 = vadd.xlane.f32.xlu0 %v459
    %v486 = vpop.xlane.xlu0 %485
    %487 = vadd.xlane.f32.xlu0 %v460
    %v488 = vpop.xlane.xlu0 %487
    %489 = vadd.xlane.f32.xlu0 %v461
    %v490 = vpop.xlane.xlu0 %489
    %491 = vadd.xlane.f32.xlu0 %v462
    %v492 = vpop.xlane.xlu0 %491
    %493 = vadd.xlane.f32.xlu0 %v463
    %v494 = vpop.xlane.xlu0 %493
    %495 = vadd.xlane.f32.xlu0 %v464
    %v496 = vpop.xlane.xlu0 %495
    %v497 = vmul.f32 %v466, %v432
    %v498 = vmul.f32 %v468, %v432
    %v499 = vmul.f32 %v470, %v432
    %v500 = vmul.f32 %v472, %v432
    %v501 = vmul.f32 %v474, %v432
    %v502 = vmul.f32 %v476, %v432
    %v503 = vmul.f32 %v478, %v432
    %v504 = vmul.f32 %v480, %v432
    %v505 = vmul.f32 %v482, %v432
    %v506 = vmul.f32 %v484, %v432
    %v507 = vmul.f32 %v486, %v432
    %v508 = vmul.f32 %v488, %v432
    %v509 = vmul.f32 %v490, %v432
    %v510 = vmul.f32 %v492, %v432
    %v511 = vmul.f32 %v494, %v432
    %v512 = vmul.f32 %v496, %v432
    %v513 = vmul.f32 %v433, %v433
    %v514 = vmul.f32 %v434, %v434
    %v515 = vmul.f32 %v435, %v435
    %v516 = vmul.f32 %v436, %v436
    %v517 = vmul.f32 %v437, %v437
    %v518 = vmul.f32 %v438, %v438
    %v519 = vmul.f32 %v439, %v439
    %v520 = vmul.f32 %v440, %v440
    %v521 = vmul.f32 %v441, %v441
    %v522 = vmul.f32 %v442, %v442
    %v523 = vmul.f32 %v443, %v443
    %v524 = vmul.f32 %v444, %v444
    %v525 = vmul.f32 %v445, %v445
    %v526 = vmul.f32 %v446, %v446
    %v527 = vmul.f32 %v447, %v447
    %v528 = vmul.f32 %v448, %v448
    %v529 = vsub.f32 %v497, %v513
    %v530 = vsub.f32 %v498, %v514
    %v531 = vsub.f32 %v499, %v515
    %v532 = vsub.f32 %v500, %v516
    %v533 = vsub.f32 %v501, %v517
    %v534 = vsub.f32 %v502, %v518
    %v535 = vsub.f32 %v503, %v519
    %v536 = vsub.f32 %v504, %v520
    %v537 = vsub.f32 %v505, %v521
    %v538 = vsub.f32 %v506, %v522
    %v539 = vsub.f32 %v507, %v523
    %v540 = vsub.f32 %v508, %v524
    %v541 = vsub.f32 %v509, %v525
    %v542 = vsub.f32 %v510, %v526
    %v543 = vsub.f32 %v511, %v527
    %v544 = vsub.f32 %v512, %v528
    %v545 = vmax.f32 %v529, 0.0
    %v546 = vmax.f32 %v530, 0.0
    %v547 = vmax.f32 %v531, 0.0
    %v548 = vmax.f32 %v532, 0.0
    %v549 = vmax.f32 %v533, 0.0
    %v550 = vmax.f32 %v534, 0.0
    %v551 = vmax.f32 %v535, 0.0
    %v552 = vmax.f32 %v536, 0.0
    %v553 = vmax.f32 %v537, 0.0
    %v554 = vmax.f32 %v538, 0.0
    %v555 = vmax.f32 %v539, 0.0
    %v556 = vmax.f32 %v540, 0.0
    %v557 = vmax.f32 %v541, 0.0
    %v558 = vmax.f32 %v542, 0.0
    %v559 = vmax.f32 %v543, 0.0
    %v560 = vmax.f32 %v544, 0.0
    %v561 = vsub.f32 %v338, %v433
    %v562 = vsub.f32 %v341, %v434
    %v563 = vsub.f32 %v346, %v435
    %v564 = vsub.f32 %v349, %v436
    %v565 = vsub.f32 %v354, %v437
    %v566 = vsub.f32 %v357, %v438
    %v567 = vsub.f32 %v362, %v439
    %v568 = vsub.f32 %v365, %v440
    %v569 = vsub.f32 %v370, %v441
    %v570 = vsub.f32 %v373, %v442
    %v571 = vsub.f32 %v378, %v443
    %v572 = vsub.f32 %v381, %v444
    %v573 = vsub.f32 %v386, %v445
    %v574 = vsub.f32 %v389, %v446
    %v575 = vsub.f32 %v394, %v447
    %v576 = vsub.f32 %v397, %v448
    %v577 = vadd.f32 %v545, 1e-05
    %v578 = vadd.f32 %v546, 1e-05
    %v579 = vadd.f32 %v547, 1e-05
    %v580 = vadd.f32 %v548, 1e-05
    %v581 = vadd.f32 %v549, 1e-05
    %v582 = vadd.f32 %v550, 1e-05
    %v583 = vadd.f32 %v551, 1e-05
    %v584 = vadd.f32 %v552, 1e-05
    %v585 = vadd.f32 %v553, 1e-05
    %v586 = vadd.f32 %v554, 1e-05
    %v587 = vadd.f32 %v555, 1e-05
    %v588 = vadd.f32 %v556, 1e-05
    %v589 = vadd.f32 %v557, 1e-05
    %v590 = vadd.f32 %v558, 1e-05
    %v591 = vadd.f32 %v559, 1e-05
    %v592 = vadd.f32 %v560, 1e-05
    %v593 = vrsqrt.pop %v577
    %v594 = vrsqrt.pop %v578
    %v595 = vrsqrt.pop %v579
    %v596 = vrsqrt.pop %v580
    %v597 = vrsqrt.pop %v581
    %v598 = vrsqrt.pop %v582
    %v599 = vrsqrt.pop %v583
    %v600 = vrsqrt.pop %v584
    %v601 = vrsqrt.pop %v585
    %v602 = vrsqrt.pop %v586
    %v603 = vrsqrt.pop %v587
    %v604 = vrsqrt.pop %v588
    %v605 = vrsqrt.pop %v589
    %v606 = vrsqrt.pop %v590
    %v607 = vrsqrt.pop %v591
    %v608 = vrsqrt.pop %v592
    %v609 = vmul.f32 %v561, %v593
    %v610 = vmul.f32 %v562, %v594
    %v611 = vmul.f32 %v563, %v595
    %v612 = vmul.f32 %v564, %v596
    %v613 = vmul.f32 %v565, %v597
    %v614 = vmul.f32 %v566, %v598
    %v615 = vmul.f32 %v567, %v599
    %v616 = vmul.f32 %v568, %v600
    %v617 = vmul.f32 %v569, %v601
    %v618 = vmul.f32 %v570, %v602
    %v619 = vmul.f32 %v571, %v603
    %v620 = vmul.f32 %v572, %v604
    %v621 = vmul.f32 %v573, %v605
    %v622 = vmul.f32 %v574, %v606
    %v623 = vmul.f32 %v575, %v607
    %v624 = vmul.f32 %v576, %v608
    %v625 = vld [vmem:[%s2] sm:$0x1]
    %v627 = vlaneseq
    %v628 = vshrl.u32 %v627, 7
    %v629 = vsub.s32 0, %v628
    %v630 = vrot.slane %v625, %v629
    %v632 = vmul.f32 %v609, %v630
    %v633 = vmul.f32 %v610, %v630
    %v634 = vmul.f32 %v611, %v630
    %v635 = vmul.f32 %v612, %v630
    %v636 = vmul.f32 %v613, %v630
    %v637 = vmul.f32 %v614, %v630
    %v638 = vmul.f32 %v615, %v630
    %v639 = vmul.f32 %v616, %v630
    %v640 = vmul.f32 %v617, %v630
    %v641 = vmul.f32 %v618, %v630
    %v642 = vmul.f32 %v619, %v630
    %v643 = vmul.f32 %v620, %v630
    %v644 = vmul.f32 %v621, %v630
    %v645 = vmul.f32 %v622, %v630
    %v646 = vmul.f32 %v623, %v630
    %v647 = vmul.f32 %v624, %v630
    %v648 = vld [vmem:[%s3] sm:$0x1]
    %v650 = vlaneseq
    %v651 = vshrl.u32 %v650, 7
    %v652 = vsub.s32 0, %v651
    %v653 = vrot.slane %v648, %v652
    %v655 = vadd.f32 %v632, %v653
    %v656 = vadd.f32 %v633, %v653
    %v657 = vadd.f32 %v634, %v653
    %v658 = vadd.f32 %v635, %v653
    %v659 = vadd.f32 %v636, %v653
    %v660 = vadd.f32 %v637, %v653
    %v661 = vadd.f32 %v638, %v653
    %v662 = vadd.f32 %v639, %v653
    %v663 = vadd.f32 %v640, %v653
    %v664 = vadd.f32 %v641, %v653
    %v665 = vadd.f32 %v642, %v653
    %v666 = vadd.f32 %v643, %v653
    %v667 = vadd.f32 %v644, %v653
    %v668 = vadd.f32 %v645, %v653
    %v669 = vadd.f32 %v646, %v653
    %v670 = vadd.f32 %v647, %v653
    %v671 = vpack.c.bf16 %v656, %v655
    %v672 = vpack.c.bf16 %v658, %v657
    %v673 = vpack.c.bf16 %v660, %v659
    %v674 = vpack.c.bf16 %v662, %v661
    %v675 = vpack.c.bf16 %v664, %v663
    %v676 = vpack.c.bf16 %v666, %v665
    %v677 = vpack.c.bf16 %v668, %v667
    %v678 = vpack.c.bf16 %v670, %v669
    %v687 = vunpack.c.l.b16 %v671
    %v688 = vunpack.c.h.b16 %v671
    %v689 = vunpack.c.l.b16 %v672
    %v690 = vunpack.c.h.b16 %v672
    %v691 = vunpack.c.l.b16 %v673
    %v692 = vunpack.c.h.b16 %v673
    %v693 = vunpack.c.l.b16 %v674
    %v694 = vunpack.c.h.b16 %v674
    %v695 = vunpack.c.l.b16 %v675
    %v696 = vunpack.c.h.b16 %v675
    %v697 = vunpack.c.l.b16 %v676
    %v698 = vunpack.c.h.b16 %v676
    %v699 = vunpack.c.l.b16 %v677
    %v700 = vunpack.c.h.b16 %v677
    %v701 = vunpack.c.l.b16 %v678
    %v702 = vunpack.c.h.b16 %v678
    %v703 = vpack.c.b16 %v687, %v687
    %v704 = vpack.c.b16 %v688, %v688
    %v705 = vpack.c.b16 %v689, %v689
    %v706 = vpack.c.b16 %v690, %v690
    %v707 = vpack.c.b16 %v691, %v691
    %v708 = vpack.c.b16 %v692, %v692
    %v709 = vpack.c.b16 %v693, %v693
    %v710 = vpack.c.b16 %v694, %v694
    %v711 = vpack.c.b16 %v695, %v695
    %v712 = vpack.c.b16 %v696, %v696
    %v713 = vpack.c.b16 %v697, %v697
    %v714 = vpack.c.b16 %v698, %v698
    %v715 = vpack.c.b16 %v699, %v699
    %v716 = vpack.c.b16 %v700, %v700
    %v717 = vpack.c.b16 %v701, %v701
    %v718 = vpack.c.b16 %v702, %v702
    %735 = vst [vmem:[#allocation7] sm:$0xf] %v703
    %736 = vst [vmem:[#allocation7 + $0x4] sm:$0xf] %v704
    %737 = vst [vmem:[#allocation7 + $0x8] sm:$0xf] %v705
    %738 = vst [vmem:[#allocation7 + $0xc] sm:$0xf] %v706
    %739 = vst [vmem:[#allocation7 + $0x10] sm:$0xf] %v707
    %740 = vst [vmem:[#allocation7 + $0x14] sm:$0xf] %v708
    %741 = vst [vmem:[#allocation7 + $0x18] sm:$0xf] %v709
    %742 = vst [vmem:[#allocation7 + $0x1c] sm:$0xf] %v710
    %743 = vst [vmem:[#allocation7 + $0x20] sm:$0xf] %v711
    %744 = vst [vmem:[#allocation7 + $0x24] sm:$0xf] %v712
    %745 = vst [vmem:[#allocation7 + $0x28] sm:$0xf] %v713
    %746 = vst [vmem:[#allocation7 + $0x2c] sm:$0xf] %v714
    %747 = vst [vmem:[#allocation7 + $0x30] sm:$0xf] %v715
    %748 = vst [vmem:[#allocation7 + $0x34] sm:$0xf] %v716
    %749 = vst [vmem:[#allocation7 + $0x38] sm:$0xf] %v717
    %750 = vst [vmem:[#allocation7 + $0x3c] sm:$0xf] %v718
    // Predicated region
    $region26: #{tpu_custom_call.1} parent=1 // pred_check
      _
    $region27: #{tpu_custom_call.1} parent=1 // pred_check_branch
      %752 = sbr.rel (0) target = $region29
    $region28: #{tpu_custom_call.1} parent=1 // pred_region
      %s754 = ssub.s32 1024, 1024
      %755 = vsyncadd [#allocation4], %s754
      %s756 = sshll.u32 [#allocation7], 4
      %s757 = int_to_ptr.vmem [resolvable:$true] %s756
      %762 = dma.vmem_to_hbm [thread:$0]  %s757, 1024, %s4, [#allocation4], 64, 64, 4
    $region29: #{tpu_custom_call.1} parent=1 // pred_fallthru
      _
    // Predicated region
    $region30: #{tpu_custom_call.1} parent=1 // pred_check
      _
    $region31: #{tpu_custom_call.1} parent=1 // pred_check_branch
      %764 = sbr.rel (0) target = $region33
    $region32: #{tpu_custom_call.1} parent=1 // pred_region
      %765 = dma.done [#allocation4], 1024
    $region33: #{tpu_custom_call.1} parent=1 // pred_fallthru
      _
    %766 = vsyncpa [#allocation3], 1
    %767 = vsyncpa [#allocation6], 1
    %768 = vsyncpa [#allocation4], 1

</llo_original>
